<compile_context>
chip_gen: v5e
topology: v5e:2x2
jax: 0.10.0
libtpu: 0.0.40
codegen_flags: <defaults>
</compile_context>

<pallas_src>
import jax
import jax.numpy as jnp
from jax.experimental import pallas as pl
from jax.experimental.pallas import tpu as pltpu


def _round_up(x, m):
    return ((x + m - 1) // m) * m


def _vmem_capacity_bytes():
    # Per-TensorCore VMEM: 128 MiB on v5e/v6e, 64 MiB on v7x.
    try:
        return int(pltpu.get_tpu_info().vmem_capacity_bytes)
    except Exception:
        return 64 * 1024 * 1024  # conservative fallback works on every generation


def _select_nk_tiles(in_size, out_size):
    """Choose the lane (N) and reduction (K) tiling; independent of batch size."""
    n_cat = 2 * out_size
    n_base = _round_up(n_cat, 128)
    if n_base <= 1024:
        tn = n_base                      # single N tile, fully lane-dense
        n_pad = n_base
    else:
        tn = 512                         # multiple of 256: full-width MXU on v6e/v7x
        n_pad = _round_up(n_base, tn)

    if in_size <= 2048:
        tk, k_pad = in_size, in_size     # single K tile -> accumulator-free kernel
    else:
        tk = None
        for cand in (2048, 1536, 1024, 768, 512, 384, 256, 128):
            if in_size % cand == 0:
                tk = cand
                break
        if tk is None:
            tk = 512                     # awkward in_size: bound tk, zero-pad K
        k_pad = _round_up(in_size, tk)
    return tn, n_pad, tk, k_pad


def prepare_split_fc_weights(w_mean, w_logvar):
    """Build the fused, lane/K-padded weight once per weight update (hoist from forward).

    w_mean / w_logvar: [in_size, out_size].  Returns [k_pad, n_pad] zero-padded slab.
    """
    in_size, out_size = w_mean.shape
    assert w_logvar.shape == (in_size, out_size)
    _, n_pad, _, k_pad = _select_nk_tiles(in_size, out_size)
    w_cat = jnp.concatenate([w_mean, w_logvar], axis=1)
    if (k_pad != in_size) or (n_pad != 2 * out_size):
        w_cat = jnp.pad(w_cat, ((0, k_pad - in_size), (0, n_pad - 2 * out_size)))
    return w_cat


# ----------------------------- kernels ---------------------------------------


def _fc_kernel_single_k(x_ref, w_ref, o_ref):
    # One K tile: no scratch, no zero-init, single lane-dense store.
    o_ref[...] = jnp.dot(
        x_ref[...], w_ref[...], preferred_element_type=jnp.float32
    ).astype(o_ref.dtype)


def _fc_kernel_multi_k_f32out(x_ref, w_ref, o_ref):
    # f32 output: accumulate directly into the VMEM-resident output block
    # (output block index is constant across the K axis).
    k = pl.program_id(2)
    part = jnp.dot(x_ref[...], w_ref[...], preferred_element_type=jnp.float32)

    @pl.when(k == 0)
    def _assign():
        o_ref[...] = part

    @pl.when(k > 0)
    def _accumulate():
        o_ref[...] += part


def _fc_kernel_multi_k_acc(x_ref, w_ref, o_ref, acc_ref):
    # Narrow output dtype: f32 accumulator scratch; k==0 assigns (no zero-init pass).
    k = pl.program_id(2)
    part = jnp.dot(x_ref[...], w_ref[...], preferred_element_type=jnp.float32)

    @pl.when(k == 0)
    def _assign():
        acc_ref[...] = part

    @pl.when(k > 0)
    def _accumulate():
        acc_ref[...] += part

    @pl.when(k == pl.num_programs(2) - 1)
    def _finalize():
        o_ref[...] = acc_ref[...].astype(o_ref.dtype)


# ----------------------------- wrapper ---------------------------------------


def spiking_fc_layer_split_forward(x, w_mean, w_logvar, w_fused=None):
    """Returns (mean, logvar) = (x @ w_mean, x @ w_logvar); weights are [in_size, out_size].

    Pass `w_fused=prepare_split_fc_weights(w_mean, w_logvar)` to reuse the fused,
    padded weight slab across calls (avoids a per-call concat/pad HBM write).
    """
    in_size = x.shape[-1]
    out_size = w_mean.shape[1]
    assert w_mean.shape == (in_size, out_size) and w_logvar.shape == (in_size, out_size)
    lead = x.shape[:-1]

    x2 = x.reshape(-1, in_size)
    M = x2.shape[0]

    out_dtype = x.dtype
    sx = jnp.dtype(x.dtype).itemsize
    sw = jnp.dtype(w_mean.dtype).itemsize
    so = jnp.dtype(out_dtype).itemsize
    sub = {4: 8, 2: 16, 1: 32}.get(sx, 8)   # dtype-dependent sublane granularity

    tn, n_pad, tk, k_pad = _select_nk_tiles(in_size, out_size)
    gk = k_pad // tk
    multi_k = gk > 1
    use_acc_scratch = multi_k and out_dtype != jnp.float32

    if w_fused is None or tuple(w_fused.shape) != (k_pad, n_pad):
        w_fused = prepare_split_fc_weights(w_mean, w_logvar)

    if k_pad != in_size:
        # Bounded-tk fallback for awkward in_size: zero-pad x along K so every K
        # block is a full 128-multiple (keeps v7x's 64 MiB VMEM budget intact;
        # padded K rows of w are zero, so the reduction is unchanged).
        x2 = jnp.pad(x2, ((0, 0), (0, k_pad - in_size)))

    # --- batch tile: as large as VMEM allows.  Big tiles amortize the ~0.35 us
    #     per-grid-step overhead and minimize weight re-streaming (dominant on
    #     v5e's ~820 GB/s HBM); the budget is derived from the real per-TC VMEM
    #     so v7x (64 MiB) shrinks tiles instead of OOMing. ---
    vmem_cap = _vmem_capacity_bytes()
    budget = int(0.70 * vmem_cap)
    tm_target = 1024 if vmem_cap >= 96 * 1024 * 1024 else 512
    tm = max(sub, min(_round_up(tm_target, sub), _round_up(M, sub)))

    def _resident(tm_):
        r = 2 * (tm_ * tk * sx + tk * tn * sw + tm_ * tn * so)  # double-buffered blocks
        if use_acc_scratch:
            r += tm_ * tn * 4
        return r

    while _resident(tm) > budget and tm > sub:
        tm = max(sub, _round_up(tm // 2, sub))

    # --- megacore / v7x: guarantee >=2 parallel tiles when the batch allows it,
    #     so both TensorCores get work even for single-tile problems. ---
    gm, gn = -(-M // tm), n_pad // tn
    if gm * gn == 1:
        tm_half = _round_up(-(-M // 2), sub)
        if tm_half < tm:
            tm = tm_half
    gm = -(-M // tm)

    vmem_limit = max(32 * 1024 * 1024, int(_resident(tm) * 1.4) + (2 << 20))
    vmem_limit = min(vmem_limit, int(0.92 * vmem_cap))

    cost = pl.CostEstimate(
        flops=2 * M * in_size * 2 * out_size,
        transcendentals=0,
        bytes_accessed=(gn * M * k_pad * sx          # x re-streamed once per N tile
                        + gm * k_pad * n_pad * sw    # w re-streamed once per M tile
                        + M * n_pad * so),
    )

    if not multi_k:
        out = pl.pallas_call(
            _fc_kernel_single_k,
            out_shape=jax.ShapeDtypeStruct((M, n_pad), out_dtype),
            grid_spec=pltpu.PrefetchScalarGridSpec(
                num_scalar_prefetch=0,
                grid=(gm, gn),
                in_specs=[
                    pl.BlockSpec((tm, k_pad), lambda i, j: (i, 0)),
                    pl.BlockSpec((k_pad, tn), lambda i, j: (0, j)),
                ],
                out_specs=pl.BlockSpec((tm, tn), lambda i, j: (i, j)),
            ),
            compiler_params=pltpu.CompilerParams(
                dimension_semantics=("parallel", "parallel"),
                vmem_limit_bytes=vmem_limit,
            ),
            cost_estimate=cost,
        )(x2, w_fused)
    else:
        kernel = _fc_kernel_multi_k_acc if use_acc_scratch else _fc_kernel_multi_k_f32out
        scratch = [pltpu.VMEM((tm, tn), jnp.float32)] if use_acc_scratch else []
        out = pl.pallas_call(
            kernel,
            out_shape=jax.ShapeDtypeStruct((M, n_pad), out_dtype),
            grid_spec=pltpu.PrefetchScalarGridSpec(
                num_scalar_prefetch=0,
                grid=(gm, gn, gk),
                in_specs=[
                    pl.BlockSpec((tm, tk), lambda i, j, k: (i, k)),
                    pl.BlockSpec((tk, tn), lambda i, j, k: (k, j)),
                ],
                out_specs=pl.BlockSpec((tm, tn), lambda i, j, k: (i, j)),
                scratch_shapes=scratch,
            ),
            compiler_params=pltpu.CompilerParams(
                dimension_semantics=("parallel", "parallel", "arbitrary"),
                vmem_limit_bytes=vmem_limit,
            ),
            cost_estimate=cost,
        )(x2, w_fused)

    # Cheap, XLA-fusable slices of the fused lane-dense output.
    mean = out[:, :out_size].reshape(*lead, out_size)
    logvar = out[:, out_size:2 * out_size].reshape(*lead, out_size)
    return mean, logvar


if __name__ == "__main__":
    key = jax.random.PRNGKey(0)
    fwd = jax.jit(spiking_fc_layer_split_forward)

    # --- case 1: small, matches the module's typical use (2D input) ---
    batch, in_size, out_size = 2, 32, 16
    kx, km, kl, key = jax.random.split(key, 4)
    bound = float(1.0 / (in_size ** 0.5))
    x = jax.random.normal(kx, (batch, in_size), dtype=jnp.float32)
    w_mean = jax.random.uniform(km, (in_size, out_size), minval=-bound, maxval=bound,
                                dtype=jnp.float32)
    w_logvar = jax.random.uniform(kl, (in_size, out_size), minval=-bound, maxval=bound,
                                  dtype=jnp.float32)

    mean, logvar = fwd(x, w_mean, w_logvar)
    jax.block_until_ready((mean, logvar))

    ref_mean, ref_logvar = x @ w_mean, x @ w_logvar
    assert mean.shape == (batch, out_size) and logvar.shape == (batch, out_size)
    assert jnp.allclose(mean, ref_mean, atol=1e-5, rtol=1e-5)
    assert jnp.allclose(logvar, ref_logvar, atol=1e-5, rtol=1e-5)

    # --- case 2: leading dims + non-divisible M (partial-block path, 2 M tiles) ---
    b2, s2, in2, out2 = 5, 37, 256, 40
    kx2, km2, kl2, key = jax.random.split(key, 4)
    bound2 = float(1.0 / (in2 ** 0.5))
    x2 = jax.random.normal(kx2, (b2, s2, in2), dtype=jnp.float32)
    wm2 = jax.random.uniform(km2, (in2, out2), minval=-bound2, maxval=bound2,
                             dtype=jnp.float32)
    wl2 = jax.random.uniform(kl2, (in2, out2), minval=-bound2, maxval=bound2,
                             dtype=jnp.float32)

    mean2, logvar2 = fwd(x2, wm2, wl2)
    jax.block_until_ready((mean2, logvar2))

    ref_mean2 = x2.reshape(-1, in2) @ wm2
    ref_logvar2 = x2.reshape(-1, in2) @ wl2
    assert mean2.shape == (b2, s2, out2) and logvar2.shape == (b2, s2, out2)
    assert jnp.allclose(mean2.reshape(-1, out2), ref_mean2, atol=1e-4, rtol=1e-4)
    assert jnp.allclose(logvar2.reshape(-1, out2), ref_logvar2, atol=1e-4, rtol=1e-4)

    # --- case 3: K-tiled fallback (in_size > 2048, no 128-multiple divisor) ---
    b3, s3, in3, out3 = 3, 11, 2200, 96
    kx3, km3, kl3, key = jax.random.split(key, 4)
    bound3 = float(1.0 / (in3 ** 0.5))
    x3 = jax.random.normal(kx3, (b3, s3, in3), dtype=jnp.float32)
    wm3 = jax.random.uniform(km3, (in3, out3), minval=-bound3, maxval=bound3,
                             dtype=jnp.float32)
    wl3 = jax.random.uniform(kl3, (in3, out3), minval=-bound3, maxval=bound3,
                             dtype=jnp.float32)
    w_fused3 = prepare_split_fc_weights(wm3, wl3)   # hoisted weight prep, reused per call

    mean3, logvar3 = fwd(x3, wm3, wl3, w_fused3)
    jax.block_until_ready((mean3, logvar3))

    ref_mean3 = x3.reshape(-1, in3) @ wm3
    ref_logvar3 = x3.reshape(-1, in3) @ wl3
    assert mean3.shape == (b3, s3, out3) and logvar3.shape == (b3, s3, out3)
    assert jnp.allclose(mean3.reshape(-1, out3), ref_mean3, atol=2e-2, rtol=2e-2)
    assert jnp.allclose(logvar3.reshape(-1, out3), ref_logvar3, atol=2e-2, rtol=2e-2)

    print("KERNEL_OK")
</pallas_src>

<mosaic_0001>
module attributes {stable_mosaic.version = 11 : i64} {
  func.func @_fc_kernel_single_k(%arg0: i32, %arg1: i32, %arg2: memref<8x32xf32, #tpu.memory_space<vmem>>, %arg3: memref<32x128xf32, #tpu.memory_space<vmem>>, %arg4: memref<8x128xf32, #tpu.memory_space<vmem>>) attributes {dimension_semantics = [#tpu.dimension_semantics<parallel>, #tpu.dimension_semantics<parallel>], iteration_bounds = array<i64: 1, 1>, scalar_prefetch = 0 : i64, scratch_operands = 0 : i64, tpu.core_type = #tpu.core_type<tc>, window_params = [{transform_indices = @transform_0, window_bounds = array<i64: 8, 32>}, {transform_indices = @transform_1, window_bounds = array<i64: 32, 128>}, {transform_indices = @transform_2, window_bounds = array<i64: 8, 128>}]} {
    %c0 = arith.constant 0 : index
    %c0_0 = arith.constant 0 : index
    %0 = vector.load %arg2[%c0, %c0_0] : memref<8x32xf32, #tpu.memory_space<vmem>>, vector<8x32xf32>
    %c0_1 = arith.constant 0 : index
    %c0_2 = arith.constant 0 : index
    %1 = vector.load %arg3[%c0_1, %c0_2] : memref<32x128xf32, #tpu.memory_space<vmem>>, vector<32x128xf32>
    %cst = arith.constant dense<0.000000e+00> : vector<8x128xf32>
    %2 = tpu.matmul %0, %1, %cst {dimension_numbers = #tpu.dot_dimension_numbers<[1], [0], [0], [1], [0, 0, 1, 1], [], []>} : vector<8x32xf32>, vector<32x128xf32>, vector<8x128xf32> -> vector<8x128xf32>
    %c0_3 = arith.constant 0 : index
    %c0_4 = arith.constant 0 : index
    %3 = vector.load %arg4[%c0_3, %c0_4] : memref<8x128xf32, #tpu.memory_space<vmem>>, vector<8x128xf32>
    tpu.vector_store %arg4[%c0_3, %c0_4], %2 {strides = array<i32>} : memref<8x128xf32, #tpu.memory_space<vmem>>, vector<8x128xf32>,
    return
  }
  func.func @transform_0(%arg0: i32, %arg1: i32) -> (i32, i32) {
    %c0_i32 = arith.constant 0 : i32
    %c0_i32_0 = arith.constant 0 : i32
    return %arg0, %c0_i32 : i32, i32
  }
  func.func @transform_1(%arg0: i32, %arg1: i32) -> (i32, i32) {
    %c0_i32 = arith.constant 0 : i32
    %c0_i32_0 = arith.constant 0 : i32
    return %c0_i32, %arg1 : i32, i32
  }
  func.func @transform_2(%arg0: i32, %arg1: i32) -> (i32, i32) {
    %c0_i32 = arith.constant 0 : i32
    return %arg0, %arg1 : i32, i32
  }
}

</mosaic_0001>

<llo_original>
// kernel: spiking_fc_layer_split_forward.1
$region0: #{spiking_fc_layer_split_forward.1}
  #allocation0 [shape = 'u32[]', space=smem, size = 0x4, offset = 0x4, fixed_abs, tag = 'smem constant byte address 0x4 - core index']
  #allocation1 [shape = 'u32[72,128]{1,0:T(1,128)}', space=vmem, size = 0x9000, scoped, tag = 'internal scratch']
  %s0 = inlined_call_operand.vmem [shape: f32[2,32], index: 0, kind: input, shape index: {}]
  %s1 = inlined_call_operand.vmem [shape: f32[32,128], index: 1, kind: input, shape index: {}]
  %s2 = inlined_call_operand.vmem [shape: f32[2,128], index: 2, kind: output, shape index: {}]
  %s3 = sld [smem:[#allocation0]]
  $region48: #{spiking_fc_layer_split_forward.1} parent=0
    _
  %s5 = ssub.s32 1, %s3
  %s6 = scalar_select 0, %s5, %s3
  $region1: #{spiking_fc_layer_split_forward.1} parent=0
    #allocation2 [shape = 'u8[4096]{0}', space=vmem, size = 0x1000, scoped, tag = 'output window, operand 0, single buffered']
    // Predicated region
    $region2: #{spiking_fc_layer_split_forward.1} parent=1 // pred_check
      _
    $region3: #{spiking_fc_layer_split_forward.1} parent=1 // pred_check_branch
      %8 = sbr.rel (0) target = $region5
    $region4: #{spiking_fc_layer_split_forward.1} parent=1 // pred_region
      _
    $region5: #{spiking_fc_layer_split_forward.1} parent=1 // pred_fallthru
      _
    // Predicated region
    $region6: #{spiking_fc_layer_split_forward.1} parent=1 // pred_check
      _
    $region7: #{spiking_fc_layer_split_forward.1} parent=1 // pred_check_branch
      %10 = sbr.rel (0) target = $region9
    $region8: #{spiking_fc_layer_split_forward.1} parent=1 // pred_region
      _
    $region9: #{spiking_fc_layer_split_forward.1} parent=1 // pred_fallthru
      _
    %v11 = vld [vmem:[%s0] sm:$0xff]
    %v12 = vld [vmem:[%s1] sm:$0xff]
    %v13 = vld [vmem:[%s1 + $0x8] sm:$0xff]
    %v14 = vld [vmem:[%s1 + $0x10] sm:$0xff]
    %v15 = vld [vmem:[%s1 + $0x18] sm:$0xff]
    %vm16 = vcmask 261120
    %v18 = vsel %vm16, %v11, 0
    %20 = vmatpush.msra.mxu0 0.0
    %21 = vmatpush.msra.mxu0 0.0
    %22 = vmatpush.msra.mxu0 0.0
    %23 = vmatpush.msra.mxu0 0.0
    %24 = vmatpush.msra.mxu0 0.0
    %25 = vmatpush.msra.mxu0 0.0
    %26 = vmatpush.msra.mxu0 0.0
    %27 = vmatpush.msra.mxu0 0.0
    %28 = vmatpush.msra.mxu0 0.0
    %29 = vmatpush.msra.mxu0 0.0
    %30 = vmatpush.msra.mxu0 0.0
    %31 = vmatpush.msra.mxu0 0.0
    %32 = vmatpush.msra.mxu0 %v15
    %33 = vmatpush.msra.mxu0 %v14
    %34 = vmatpush.msra.mxu0 %v13
    %35 = vmatpush.msra.mxu0 %v12
    %36 = vmatmul.f32.gmra.mxu0 %v18
    %v37 = vpop.f32.mrf.mxu0
    %v38 = vadd.f32 0.0, %v37
    %39 = vdwg.mxu0
    %40 = vst [vmem:[#allocation2] sm:$0xff] %v38
    // Predicated region
    $region10: #{spiking_fc_layer_split_forward.1} parent=1 // pred_check
      _
    $region11: #{spiking_fc_layer_split_forward.1} parent=1 // pred_check_branch
      %42 = sbr.rel (0) target = $region13
    $region12: #{spiking_fc_layer_split_forward.1} parent=1 // pred_region
      // Predicated region
      $region14: #{spiking_fc_layer_split_forward.1} parent=12 // pred_check
        _
      $region15: #{spiking_fc_layer_split_forward.1} parent=12 // pred_check_branch
        %44 = sbr.rel (0) target = $region17
      $region16: #{spiking_fc_layer_split_forward.1} parent=12 // pred_region
        // Predicated region
        $region18: #{spiking_fc_layer_split_forward.1} parent=16 // pred_check
          _
        $region19: #{spiking_fc_layer_split_forward.1} parent=16 // pred_check_branch
          %46 = sbr.rel target = $region21
        $region20: #{spiking_fc_layer_split_forward.1} parent=16 // pred_region
          // Predicated region
          $region33: #{spiking_fc_layer_split_forward.1} parent=20 // pred_check
            _
          $region34: #{spiking_fc_layer_split_forward.1} parent=20 // pred_check_branch
            %62 = sbr.rel (0) target = $region36
          $region35: #{spiking_fc_layer_split_forward.1} parent=20 // pred_region
            %s64 = ssub.s32 4, 1
            loop: start=0, step=1, limit=1
            $region37: #{spiking_fc_layer_split_forward.1} parent=35 // loop_pre_header
              _
            $region38: #{spiking_fc_layer_split_forward.1} parent=35 // loop_header
              %s66 = sphi 0, %s70
              %p67 = scmp.ge.s32.totalorder %s66, 1
              %s71 = sphi [#allocation2], [#allocation2]
              %s72 = sphi %s2, %s2
            $region39: #{spiking_fc_layer_split_forward.1} parent=35 // loop_header_branch
              %69 = sbr.rel (%p67) target = $region43
            $region40: #{spiking_fc_layer_split_forward.1} parent=35 // loop_body
              %v73 = vld [vmem:[%s71] sm:%s64]
              %74 = vst [vmem:[%s72] sm:%s64] %v73
            $region41: #{spiking_fc_layer_split_forward.1} parent=35 // loop_footer
              %s70 = sadd.s32 1, %s66
            $region42: #{spiking_fc_layer_split_forward.1} parent=35 // loop_footer_branch
              %65 = sbr.rel target = $region38
            $region43: #{spiking_fc_layer_split_forward.1} parent=35 // loop_exit
              _
          $region36: #{spiking_fc_layer_split_forward.1} parent=20 // pred_fallthru
            _
        $region21: #{spiking_fc_layer_split_forward.1} parent=16 // pred_fallthru
          _
        // Predicated region
        $region22: #{spiking_fc_layer_split_forward.1} parent=16 // pred_check
          _
        $region23: #{spiking_fc_layer_split_forward.1} parent=16 // pred_check_branch
          %48 = sbr.rel (0) target = $region25
        $region24: #{spiking_fc_layer_split_forward.1} parent=16 // pred_region
          %s50 = ssub.s32 4, 1
          loop: start=0, step=1, limit=1
          $region26: #{spiking_fc_layer_split_forward.1} parent=24 // loop_pre_header
            _
          $region27: #{spiking_fc_layer_split_forward.1} parent=24 // loop_header
            %s52 = sphi 0, %s56
            %p53 = scmp.ge.s32.totalorder %s52, 1
            %s57 = sphi [#allocation2], [#allocation2]
            %s58 = sphi %s2, %s2
          $region28: #{spiking_fc_layer_split_forward.1} parent=24 // loop_header_branch
            %55 = sbr.rel (%p53) target = $region32
          $region29: #{spiking_fc_layer_split_forward.1} parent=24 // loop_body
            %v59 = vld [vmem:[%s57] sm:%s50]
            %60 = vst [vmem:[%s58] sm:%s50] %v59
          $region30: #{spiking_fc_layer_split_forward.1} parent=24 // loop_footer
            %s56 = sadd.s32 1, %s52
          $region31: #{spiking_fc_layer_split_forward.1} parent=24 // loop_footer_branch
            %51 = sbr.rel target = $region27
          $region32: #{spiking_fc_layer_split_forward.1} parent=24 // loop_exit
            _
        $region25: #{spiking_fc_layer_split_forward.1} parent=16 // pred_fallthru
          _
      $region17: #{spiking_fc_layer_split_forward.1} parent=12 // pred_fallthru
        _
      %75 = vnop
    $region13: #{spiking_fc_layer_split_forward.1} parent=1 // pred_fallthru
      _
    // Predicated region
    $region44: #{spiking_fc_layer_split_forward.1} parent=1 // pred_check
      _
    $region45: #{spiking_fc_layer_split_forward.1} parent=1 // pred_check_branch
      %77 = sbr.rel (0) target = $region47
    $region46: #{spiking_fc_layer_split_forward.1} parent=1 // pred_region
      _
    $region47: #{spiking_fc_layer_split_forward.1} parent=1 // pred_fallthru
      _

</llo_original>
